<compile_context>
chip_gen: v7x
topology: tpu7x:2x2x1
jax: 0.10.0
libtpu: 0.0.40
codegen_flags: <defaults>
</compile_context>

<pallas_src>
import functools

import jax
import jax.numpy as jnp
from jax.experimental import pallas as pl
from jax.experimental.pallas import tpu as pltpu


# ----------------------------------------------------------------------------- kernel
def _mlp_kernel(x_ref, w1t_ref, b1_ref, w2t_ref, b2_ref, out_ref):
    """One batch tile of:  relu(x @ W1^T + b1) @ W2^T + b2  (weights pre-laid-out)."""
    x = x_ref[...]                                   # (TB, F)   f32
    n_feat = x_ref.shape[1]

    if n_feat <= 8:
        # Tiny contraction (F=2): do it with broadcast FMAs on the VPU instead of
        # pushing a >98%-padded matmul through the MXU result FIFO.
        h = b1_ref[...]                              # (1, H) -> broadcasts over rows
        for f_idx in range(n_feat):                  # static, tiny unrolled loop
            h = h + x[:, f_idx:f_idx + 1] * w1t_ref[f_idx:f_idx + 1, :]
    else:
        h = jnp.dot(x, w1t_ref[...], preferred_element_type=jnp.float32) + b1_ref[...]

    h = jnp.maximum(h, 0.0)                          # ReLU (VPU)

    # Second layer (H=32 contraction) on the MXU, f32 accumulation.
    y = jnp.dot(h, w2t_ref[...], preferred_element_type=jnp.float32) + b2_ref[...]
    out_ref[...] = y.astype(out_ref.dtype)           # lane-dense (TB, O_pad) store


# ----------------------------------------------------------------------------- wrapper
def _pick_tile_b(batch):
    if batch % 8 != 0:
        return batch              # full-array block sidesteps the (8,128) rule
    return min(batch, 512)        # biggest tile that comfortably fits VMEM


def _net_forward_impl(x, w1_t, b1_row, w2_t, b2_row, *, n_output):
    """x: (B, F) f32.  w1_t: (F, H), b1_row: (1, H), w2_t: (H, O_pad), b2_row: (1, O_pad)."""
    B, F = x.shape
    H = w1_t.shape[1]
    O_pad = w2_t.shape[1]

    tile_b = _pick_tile_b(B)
    grid = (pl.cdiv(B, tile_b),)

    out = pl.pallas_call(
        _mlp_kernel,
        out_shape=jax.ShapeDtypeStruct((B, O_pad), jnp.float32),
        grid=grid,
        in_specs=[
            pl.BlockSpec((tile_b, F), lambda i: (i, 0)),   # batch-tiled activations
            pl.BlockSpec((F, H), lambda i: (0, 0)),        # weights resident
            pl.BlockSpec((1, H), lambda i: (0, 0)),
            pl.BlockSpec((H, O_pad), lambda i: (0, 0)),
            pl.BlockSpec((1, O_pad), lambda i: (0, 0)),
        ],
        out_specs=pl.BlockSpec((tile_b, O_pad), lambda i: (i, 0)),
        compiler_params=pltpu.CompilerParams(
            dimension_semantics=("parallel",),             # batch axis shards on megacore
        ),
    )(x, w1_t, b1_row, w2_t, b2_row)

    return out[:, :n_output]                               # drop lane padding


net_forward = jax.jit(_net_forward_impl, static_argnames=("n_output",))


def prepare_params(w1, b1, w2, b2, lane=128):
    """One-time layout prep (NOT in the per-call hot path).

    Torch nn.Linear layout in:  w1 (H, F), b1 (H,), w2 (O, H), b2 (O,).
    Out: w1_t (F, H), b1_row (1, H), w2_t (H, O_pad), b2_row (1, O_pad),
    with the output feature dim zero-padded to a multiple of 128 lanes.
    """
    H, F = w1.shape
    O = w2.shape[0]
    O_pad = ((O + lane - 1) // lane) * lane

    w1_t = jnp.asarray(w1, jnp.float32).T                          # (F, H)
    b1_row = jnp.asarray(b1, jnp.float32).reshape(1, H)            # (1, H)
    w2_t = jnp.zeros((H, O_pad), jnp.float32).at[:, :O].set(
        jnp.asarray(w2, jnp.float32).T)                            # (H, O_pad)
    b2_row = jnp.zeros((1, O_pad), jnp.float32).at[:, :O].set(
        jnp.asarray(b2, jnp.float32))                              # (1, O_pad)
    return w1_t, b1_row, w2_t, b2_row


def init_params(key, n_feature, n_hidden, n_output):
    """Deterministic init matching torch.nn.Linear parameter shapes."""
    k1, k2, k3, k4 = jax.random.split(key, 4)
    bound1 = 1.0 / jnp.sqrt(n_feature)
    bound2 = 1.0 / jnp.sqrt(n_hidden)
    w1 = jax.random.uniform(k1, (n_hidden, n_feature), jnp.float32, -bound1, bound1)
    b1 = jax.random.uniform(k2, (n_hidden,), jnp.float32, -bound1, bound1)
    w2 = jax.random.uniform(k3, (n_output, n_hidden), jnp.float32, -bound2, bound2)
    b2 = jax.random.uniform(k4, (n_output,), jnp.float32, -bound2, bound2)
    return w1, b1, w2, b2


# ----------------------------------------------------------------------------- driver
if __name__ == "__main__":
    key = jax.random.PRNGKey(0)
    k_params, k_x0, k_x1 = jax.random.split(key, 3)

    # Shapes implied by the script: n_feature=2, n_output=2; hidden width 32.
    n_feature, n_hidden, n_output = 2, 32, 2
    per_class = 100                                   # full dataset, as in the original

    # Deterministic stand-in for the torch.normal(+/-2, 1) two-blob data.
    x0 = 2.0 + jax.random.normal(k_x0, (per_class, n_feature), jnp.float32)
    x1 = -2.0 + jax.random.normal(k_x1, (per_class, n_feature), jnp.float32)
    x = jnp.concatenate([x0, x1], axis=0)             # (200, 2) float32

    w1, b1, w2, b2 = init_params(k_params, n_feature, n_hidden, n_output)
    w1_t, b1_row, w2_t, b2_row = prepare_params(w1, b1, w2, b2)   # one-time layout prep

    out = net_forward(x, w1_t, b1_row, w2_t, b2_row, n_output=n_output)
    out = jax.block_until_ready(out)

    # Reference check (exact-f32 matmuls so the tolerance is meaningful even if the
    # kernel's MXU path uses the default reduced-precision f32 passes).
    h_ref = jnp.maximum(
        jnp.dot(x, w1.T, precision=jax.lax.Precision.HIGHEST) + b1, 0.0)
    ref = jnp.dot(h_ref, w2.T, precision=jax.lax.Precision.HIGHEST) + b2

    assert out.shape == (2 * per_class, n_output)
    assert jnp.allclose(out, ref, atol=5e-2, rtol=5e-2), float(jnp.abs(out - ref).max())

    print("KERNEL_OK")
</pallas_src>

<mosaic_0001>
module attributes {stable_mosaic.version = 11 : i64} {
  func.func @_mlp_kernel(%arg0: i32, %arg1: memref<200x2xf32, #tpu.memory_space<vmem>>, %arg2: memref<2x32xf32, #tpu.memory_space<vmem>>, %arg3: memref<1x32xf32, #tpu.memory_space<vmem>>, %arg4: memref<32x128xf32, #tpu.memory_space<vmem>>, %arg5: memref<1x128xf32, #tpu.memory_space<vmem>>, %arg6: memref<200x128xf32, #tpu.memory_space<vmem>>) attributes {dimension_semantics = [#tpu.dimension_semantics<parallel>], iteration_bounds = array<i64: 1>, scalar_prefetch = 0 : i64, scratch_operands = 0 : i64, tpu.core_type = #tpu.core_type<tc>, window_params = [{transform_indices = @transform_0, window_bounds = array<i64: 200, 2>}, {pipeline_mode = #tpu.pipeline_mode<synchronous>, transform_indices = @transform_1, window_bounds = array<i64: 2, 32>}, {pipeline_mode = #tpu.pipeline_mode<synchronous>, transform_indices = @transform_2, window_bounds = array<i64: 1, 32>}, {pipeline_mode = #tpu.pipeline_mode<synchronous>, transform_indices = @transform_3, window_bounds = array<i64: 32, 128>}, {pipeline_mode = #tpu.pipeline_mode<synchronous>, transform_indices = @transform_4, window_bounds = array<i64: 1, 128>}, {transform_indices = @transform_5, window_bounds = array<i64: 200, 128>}]} {
    %c0 = arith.constant 0 : index
    %c0_0 = arith.constant 0 : index
    %0 = vector.load %arg1[%c0, %c0_0] : memref<200x2xf32, #tpu.memory_space<vmem>>, vector<200x2xf32>
    %c0_1 = arith.constant 0 : index
    %c0_2 = arith.constant 0 : index
    %1 = vector.load %arg3[%c0_1, %c0_2] : memref<1x32xf32, #tpu.memory_space<vmem>>, vector<1x32xf32>
    %2 = vector.extract_strided_slice %0 {offsets = [0, 0], sizes = [200, 1], strides = [1, 1]} : vector<200x2xf32> to vector<200x1xf32>
    %c0_3 = arith.constant 0 : index
    %c0_4 = arith.constant 0 : index
    %3 = vector.load %arg2[%c0_3, %c0_4] : memref<2x32xf32, #tpu.memory_space<vmem>>, vector<1x32xf32>
    %4 = vector.broadcast %2 : vector<200x1xf32> to vector<200x32xf32>
    %5 = vector.broadcast %3 : vector<1x32xf32> to vector<200x32xf32>
    %6 = arith.mulf %4, %5 : vector<200x32xf32>
    %7 = vector.broadcast %1 : vector<1x32xf32> to vector<200x32xf32>
    %8 = arith.addf %7, %6 : vector<200x32xf32>
    %9 = vector.extract_strided_slice %0 {offsets = [0, 1], sizes = [200, 1], strides = [1, 1]} : vector<200x2xf32> to vector<200x1xf32>
    %c1 = arith.constant 1 : index
    %c0_5 = arith.constant 0 : index
    %10 = vector.load %arg2[%c1, %c0_5] : memref<2x32xf32, #tpu.memory_space<vmem>>, vector<1x32xf32>
    %11 = vector.broadcast %9 : vector<200x1xf32> to vector<200x32xf32>
    %12 = vector.broadcast %10 : vector<1x32xf32> to vector<200x32xf32>
    %13 = arith.mulf %11, %12 : vector<200x32xf32>
    %14 = arith.addf %8, %13 : vector<200x32xf32>
    %cst = arith.constant 0.000000e+00 : f32
    %15 = vector.broadcast %cst : f32 to vector<200x32xf32>
    %16 = arith.maximumf %14, %15 : vector<200x32xf32>
    %c0_6 = arith.constant 0 : index
    %c0_7 = arith.constant 0 : index
    %17 = vector.load %arg4[%c0_6, %c0_7] : memref<32x128xf32, #tpu.memory_space<vmem>>, vector<32x128xf32>
    %cst_8 = arith.constant dense<0.000000e+00> : vector<200x128xf32>
    %18 = tpu.matmul %16, %17, %cst_8 {dimension_numbers = #tpu.dot_dimension_numbers<[1], [0], [0], [1], [0, 0, 1, 1], [], []>} : vector<200x32xf32>, vector<32x128xf32>, vector<200x128xf32> -> vector<200x128xf32>
    %c0_9 = arith.constant 0 : index
    %c0_10 = arith.constant 0 : index
    %19 = vector.load %arg5[%c0_9, %c0_10] : memref<1x128xf32, #tpu.memory_space<vmem>>, vector<1x128xf32>
    %20 = vector.broadcast %19 : vector<1x128xf32> to vector<200x128xf32>
    %21 = arith.addf %18, %20 : vector<200x128xf32>
    %c0_11 = arith.constant 0 : index
    %c0_12 = arith.constant 0 : index
    %22 = vector.load %arg6[%c0_11, %c0_12] : memref<200x128xf32, #tpu.memory_space<vmem>>, vector<200x128xf32>
    tpu.vector_store %arg6[%c0_11, %c0_12], %21 {strides = array<i32>} : memref<200x128xf32, #tpu.memory_space<vmem>>, vector<200x128xf32>,
    return
  }
  func.func @transform_0(%arg0: i32) -> (i32, i32) {
    %c0_i32 = arith.constant 0 : i32
    %c0_i32_0 = arith.constant 0 : i32
    return %arg0, %c0_i32 : i32, i32
  }
  func.func @transform_1(%arg0: i32) -> (i32, i32) {
    %c0_i32 = arith.constant 0 : i32
    %c0_i32_0 = arith.constant 0 : i32
    %c0_i32_1 = arith.constant 0 : i32
    return %c0_i32, %c0_i32_0 : i32, i32
  }
  func.func @transform_2(%arg0: i32) -> (i32, i32) {
    %c0_i32 = arith.constant 0 : i32
    %c0_i32_0 = arith.constant 0 : i32
    %c0_i32_1 = arith.constant 0 : i32
    return %c0_i32, %c0_i32_0 : i32, i32
  }
  func.func @transform_3(%arg0: i32) -> (i32, i32) {
    %c0_i32 = arith.constant 0 : i32
    %c0_i32_0 = arith.constant 0 : i32
    %c0_i32_1 = arith.constant 0 : i32
    return %c0_i32, %c0_i32_0 : i32, i32
  }
  func.func @transform_4(%arg0: i32) -> (i32, i32) {
    %c0_i32 = arith.constant 0 : i32
    %c0_i32_0 = arith.constant 0 : i32
    %c0_i32_1 = arith.constant 0 : i32
    return %c0_i32, %c0_i32_0 : i32, i32
  }
  func.func @transform_5(%arg0: i32) -> (i32, i32) {
    %c0_i32 = arith.constant 0 : i32
    %c0_i32_0 = arith.constant 0 : i32
    return %arg0, %c0_i32 : i32, i32
  }
}

</mosaic_0001>

<llo_original>
// kernel: _net_forward_impl.1
$region0: #{_net_forward_impl.1}
  #allocation0 [shape = 'u32[]', space=smem, size = 0x4, offset = 0x4, fixed_abs, tag = 'smem constant byte address 0x4 - core index']
  #allocation1 [shape = 'u32[144,128]{1,0:T(1,128)}', space=vmem, size = 0x12000, scoped, tag = 'internal scratch']
  %s0 = inlined_call_operand.vmem [shape: f32[200,2], index: 0, kind: input, shape index: {}]
  %s1 = inlined_call_operand.vmem [shape: f32[2,32], index: 1, kind: input, shape index: {}]
  %s2 = inlined_call_operand.vmem [shape: f32[1,32], index: 2, kind: input, shape index: {}]
  %s3 = inlined_call_operand.vmem [shape: f32[32,128], index: 3, kind: input, shape index: {}]
  %s4 = inlined_call_operand.vmem [shape: f32[1,128], index: 4, kind: input, shape index: {}]
  %s5 = inlined_call_operand.vmem [shape: f32[200,128], index: 5, kind: output, shape index: {}]
  %s6 = sld [smem:[#allocation0]]
  $region30: #{_net_forward_impl.1} parent=0
    _
  %s8 = ssub.s32 1, %s6
  %s9 = scalar_select 0, %s8, %s6
  // Predicated region
  $region2: #{_net_forward_impl.1} parent=0 // pred_check
    _
  $region3: #{_net_forward_impl.1} parent=0 // pred_check_branch
    %11 = sbr.rel (0) target = $region5
  $region4: #{_net_forward_impl.1} parent=0 // pred_region
    _
  $region5: #{_net_forward_impl.1} parent=0 // pred_fallthru
    _
  // Predicated region
  $region6: #{_net_forward_impl.1} parent=0 // pred_check
    _
  $region7: #{_net_forward_impl.1} parent=0 // pred_check_branch
    %13 = sbr.rel (0) target = $region9
  $region8: #{_net_forward_impl.1} parent=0 // pred_region
    _
  $region9: #{_net_forward_impl.1} parent=0 // pred_fallthru
    _
  // Predicated region
  $region10: #{_net_forward_impl.1} parent=0 // pred_check
    _
  $region11: #{_net_forward_impl.1} parent=0 // pred_check_branch
    %15 = sbr.rel (0) target = $region13
  $region12: #{_net_forward_impl.1} parent=0 // pred_region
    _
  $region13: #{_net_forward_impl.1} parent=0 // pred_fallthru
    _
  // Predicated region
  $region14: #{_net_forward_impl.1} parent=0 // pred_check
    _
  $region15: #{_net_forward_impl.1} parent=0 // pred_check_branch
    %17 = sbr.rel (0) target = $region17
  $region16: #{_net_forward_impl.1} parent=0 // pred_region
    _
  $region17: #{_net_forward_impl.1} parent=0 // pred_fallthru
    _
  // Predicated region
  $region18: #{_net_forward_impl.1} parent=0 // pred_check
    _
  $region19: #{_net_forward_impl.1} parent=0 // pred_check_branch
    %19 = sbr.rel (0) target = $region21
  $region20: #{_net_forward_impl.1} parent=0 // pred_region
    _
  $region21: #{_net_forward_impl.1} parent=0 // pred_fallthru
    _
  %v20 = vld [vmem:[%s0] sm:$0xff]
  %v21 = vld [vmem:[%s0 + $0x8] sm:$0xff]
  %v22 = vld [vmem:[%s0 + $0x10] sm:$0xff]
  %v23 = vld [vmem:[%s0 + $0x18] sm:$0xff]
  %v24 = vld [vmem:[%s0 + $0x20] sm:$0xff]
  %v25 = vld [vmem:[%s0 + $0x28] sm:$0xff]
  %v26 = vld [vmem:[%s0 + $0x30] sm:$0xff]
  %v27 = vld [vmem:[%s0 + $0x38] sm:$0xff]
  %v28 = vld [vmem:[%s0 + $0x40] sm:$0xff]
  %v29 = vld [vmem:[%s0 + $0x48] sm:$0xff]
  %v30 = vld [vmem:[%s0 + $0x50] sm:$0xff]
  %v31 = vld [vmem:[%s0 + $0x58] sm:$0xff]
  %v32 = vld [vmem:[%s0 + $0x60] sm:$0xff]
  %v33 = vld [vmem:[%s0 + $0x68] sm:$0xff]
  %v34 = vld [vmem:[%s0 + $0x70] sm:$0xff]
  %v35 = vld [vmem:[%s0 + $0x78] sm:$0xff]
  %v36 = vld [vmem:[%s0 + $0x80] sm:$0xff]
  %v37 = vld [vmem:[%s0 + $0x88] sm:$0xff]
  %v38 = vld [vmem:[%s0 + $0x90] sm:$0xff]
  %v39 = vld [vmem:[%s0 + $0x98] sm:$0xff]
  %v40 = vld [vmem:[%s0 + $0xa0] sm:$0xff]
  %v41 = vld [vmem:[%s0 + $0xa8] sm:$0xff]
  %v42 = vld [vmem:[%s0 + $0xb0] sm:$0xff]
  %v43 = vld [vmem:[%s0 + $0xb8] sm:$0xff]
  %v44 = vld [vmem:[%s0 + $0xc0] sm:$0xff]
  %v45 = vld [vmem:[%s2] sm:$0x1]
  %v46 = vld [vmem:[%s1] sm:$0x1]
  %48 = vset.pattern.permute.xlu0 0
  %49 = vperm.xlu0 %48, %v20
  %v50 = vpop.permute.xlu0 %49
  %53 = vset.pattern.permute.xlu0 0
  %54 = vperm.xlu0 %53, %v21
  %v55 = vpop.permute.xlu0 %54
  %58 = vset.pattern.permute.xlu0 0
  %59 = vperm.xlu0 %58, %v22
  %v60 = vpop.permute.xlu0 %59
  %63 = vset.pattern.permute.xlu0 0
  %64 = vperm.xlu0 %63, %v23
  %v65 = vpop.permute.xlu0 %64
  %68 = vset.pattern.permute.xlu0 0
  %69 = vperm.xlu0 %68, %v24
  %v70 = vpop.permute.xlu0 %69
  %73 = vset.pattern.permute.xlu0 0
  %74 = vperm.xlu0 %73, %v25
  %v75 = vpop.permute.xlu0 %74
  %78 = vset.pattern.permute.xlu0 0
  %79 = vperm.xlu0 %78, %v26
  %v80 = vpop.permute.xlu0 %79
  %83 = vset.pattern.permute.xlu0 0
  %84 = vperm.xlu0 %83, %v27
  %v85 = vpop.permute.xlu0 %84
  %88 = vset.pattern.permute.xlu0 0
  %89 = vperm.xlu0 %88, %v28
  %v90 = vpop.permute.xlu0 %89
  %93 = vset.pattern.permute.xlu0 0
  %94 = vperm.xlu0 %93, %v29
  %v95 = vpop.permute.xlu0 %94
  %98 = vset.pattern.permute.xlu0 0
  %99 = vperm.xlu0 %98, %v30
  %v100 = vpop.permute.xlu0 %99
  %103 = vset.pattern.permute.xlu0 0
  %104 = vperm.xlu0 %103, %v31
  %v105 = vpop.permute.xlu0 %104
  %108 = vset.pattern.permute.xlu0 0
  %109 = vperm.xlu0 %108, %v32
  %v110 = vpop.permute.xlu0 %109
  %113 = vset.pattern.permute.xlu0 0
  %114 = vperm.xlu0 %113, %v33
  %v115 = vpop.permute.xlu0 %114
  %118 = vset.pattern.permute.xlu0 0
  %119 = vperm.xlu0 %118, %v34
  %v120 = vpop.permute.xlu0 %119
  %123 = vset.pattern.permute.xlu0 0
  %124 = vperm.xlu0 %123, %v35
  %v125 = vpop.permute.xlu0 %124
  %128 = vset.pattern.permute.xlu0 0
  %129 = vperm.xlu0 %128, %v36
  %v130 = vpop.permute.xlu0 %129
  %133 = vset.pattern.permute.xlu0 0
  %134 = vperm.xlu0 %133, %v37
  %v135 = vpop.permute.xlu0 %134
  %138 = vset.pattern.permute.xlu0 0
  %139 = vperm.xlu0 %138, %v38
  %v140 = vpop.permute.xlu0 %139
  %143 = vset.pattern.permute.xlu0 0
  %144 = vperm.xlu0 %143, %v39
  %v145 = vpop.permute.xlu0 %144
  %148 = vset.pattern.permute.xlu0 0
  %149 = vperm.xlu0 %148, %v40
  %v150 = vpop.permute.xlu0 %149
  %153 = vset.pattern.permute.xlu0 0
  %154 = vperm.xlu0 %153, %v41
  %v155 = vpop.permute.xlu0 %154
  %158 = vset.pattern.permute.xlu0 0
  %159 = vperm.xlu0 %158, %v42
  %v160 = vpop.permute.xlu0 %159
  %163 = vset.pattern.permute.xlu0 0
  %164 = vperm.xlu0 %163, %v43
  %v165 = vpop.permute.xlu0 %164
  %168 = vset.pattern.permute.xlu0 0
  %169 = vperm.xlu0 %168, %v44
  %v170 = vpop.permute.xlu0 %169
  %v172 = vlaneseq
  %v173 = vshrl.u32 %v172, 7
  %v174 = vsub.s32 0, %v173
  %v175 = vrot.slane %v46, %v174
  %v176 = vmul.f32 %v50, %v175
  %v177 = vmul.f32 %v55, %v175
  %v178 = vmul.f32 %v60, %v175
  %v179 = vmul.f32 %v65, %v175
  %v180 = vmul.f32 %v70, %v175
  %v181 = vmul.f32 %v75, %v175
  %v182 = vmul.f32 %v80, %v175
  %v183 = vmul.f32 %v85, %v175
  %v184 = vmul.f32 %v90, %v175
  %v185 = vmul.f32 %v95, %v175
  %v186 = vmul.f32 %v100, %v175
  %v187 = vmul.f32 %v105, %v175
  %v188 = vmul.f32 %v110, %v175
  %v189 = vmul.f32 %v115, %v175
  %v190 = vmul.f32 %v120, %v175
  %v191 = vmul.f32 %v125, %v175
  %v192 = vmul.f32 %v130, %v175
  %v193 = vmul.f32 %v135, %v175
  %v194 = vmul.f32 %v140, %v175
  %v195 = vmul.f32 %v145, %v175
  %v196 = vmul.f32 %v150, %v175
  %v197 = vmul.f32 %v155, %v175
  %v198 = vmul.f32 %v160, %v175
  %v199 = vmul.f32 %v165, %v175
  %v200 = vmul.f32 %v170, %v175
  %v202 = vlaneseq
  %v203 = vshrl.u32 %v202, 7
  %v204 = vsub.s32 0, %v203
  %v205 = vrot.slane %v45, %v204
  %v207 = vadd.f32 %v205, %v176
  %v208 = vadd.f32 %v205, %v177
  %v209 = vadd.f32 %v205, %v178
  %v210 = vadd.f32 %v205, %v179
  %v211 = vadd.f32 %v205, %v180
  %v212 = vadd.f32 %v205, %v181
  %v213 = vadd.f32 %v205, %v182
  %v214 = vadd.f32 %v205, %v183
  %v215 = vadd.f32 %v205, %v184
  %v216 = vadd.f32 %v205, %v185
  %v217 = vadd.f32 %v205, %v186
  %v218 = vadd.f32 %v205, %v187
  %v219 = vadd.f32 %v205, %v188
  %v220 = vadd.f32 %v205, %v189
  %v221 = vadd.f32 %v205, %v190
  %v222 = vadd.f32 %v205, %v191
  %v223 = vadd.f32 %v205, %v192
  %v224 = vadd.f32 %v205, %v193
  %v225 = vadd.f32 %v205, %v194
  %v226 = vadd.f32 %v205, %v195
  %v227 = vadd.f32 %v205, %v196
  %v228 = vadd.f32 %v205, %v197
  %v229 = vadd.f32 %v205, %v198
  %v230 = vadd.f32 %v205, %v199
  %v231 = vadd.f32 %v205, %v200
  %v232 = vld [vmem:[%s1 + $0x1] sm:$0x1]
  %233 = vset.pattern.permute.xlu0 1
  %234 = vperm.xlu0 %233, %v20
  %v235 = vpop.permute.xlu0 %234
  %237 = vset.pattern.permute.xlu0 1
  %238 = vperm.xlu0 %237, %v21
  %v239 = vpop.permute.xlu0 %238
  %241 = vset.pattern.permute.xlu0 1
  %242 = vperm.xlu0 %241, %v22
  %v243 = vpop.permute.xlu0 %242
  %245 = vset.pattern.permute.xlu0 1
  %246 = vperm.xlu0 %245, %v23
  %v247 = vpop.permute.xlu0 %246
  %249 = vset.pattern.permute.xlu0 1
  %250 = vperm.xlu0 %249, %v24
  %v251 = vpop.permute.xlu0 %250
  %253 = vset.pattern.permute.xlu0 1
  %254 = vperm.xlu0 %253, %v25
  %v255 = vpop.permute.xlu0 %254
  %257 = vset.pattern.permute.xlu0 1
  %258 = vperm.xlu0 %257, %v26
  %v259 = vpop.permute.xlu0 %258
  %261 = vset.pattern.permute.xlu0 1
  %262 = vperm.xlu0 %261, %v27
  %v263 = vpop.permute.xlu0 %262
  %265 = vset.pattern.permute.xlu0 1
  %266 = vperm.xlu0 %265, %v28
  %v267 = vpop.permute.xlu0 %266
  %269 = vset.pattern.permute.xlu0 1
  %270 = vperm.xlu0 %269, %v29
  %v271 = vpop.permute.xlu0 %270
  %273 = vset.pattern.permute.xlu0 1
  %274 = vperm.xlu0 %273, %v30
  %v275 = vpop.permute.xlu0 %274
  %277 = vset.pattern.permute.xlu0 1
  %278 = vperm.xlu0 %277, %v31
  %v279 = vpop.permute.xlu0 %278
  %281 = vset.pattern.permute.xlu0 1
  %282 = vperm.xlu0 %281, %v32
  %v283 = vpop.permute.xlu0 %282
  %285 = vset.pattern.permute.xlu0 1
  %286 = vperm.xlu0 %285, %v33
  %v287 = vpop.permute.xlu0 %286
  %289 = vset.pattern.permute.xlu0 1
  %290 = vperm.xlu0 %289, %v34
  %v291 = vpop.permute.xlu0 %290
  %293 = vset.pattern.permute.xlu0 1
  %294 = vperm.xlu0 %293, %v35
  %v295 = vpop.permute.xlu0 %294
  %297 = vset.pattern.permute.xlu0 1
  %298 = vperm.xlu0 %297, %v36
  %v299 = vpop.permute.xlu0 %298
  %301 = vset.pattern.permute.xlu0 1
  %302 = vperm.xlu0 %301, %v37
  %v303 = vpop.permute.xlu0 %302
  %305 = vset.pattern.permute.xlu0 1
  %306 = vperm.xlu0 %305, %v38
  %v307 = vpop.permute.xlu0 %306
  %309 = vset.pattern.permute.xlu0 1
  %310 = vperm.xlu0 %309, %v39
  %v311 = vpop.permute.xlu0 %310
  %313 = vset.pattern.permute.xlu0 1
  %314 = vperm.xlu0 %313, %v40
  %v315 = vpop.permute.xlu0 %314
  %317 = vset.pattern.permute.xlu0 1
  %318 = vperm.xlu0 %317, %v41
  %v319 = vpop.permute.xlu0 %318
  %321 = vset.pattern.permute.xlu0 1
  %322 = vperm.xlu0 %321, %v42
  %v323 = vpop.permute.xlu0 %322
  %325 = vset.pattern.permute.xlu0 1
  %326 = vperm.xlu0 %325, %v43
  %v327 = vpop.permute.xlu0 %326
  %329 = vset.pattern.permute.xlu0 1
  %330 = vperm.xlu0 %329, %v44
  %v331 = vpop.permute.xlu0 %330
  %v333 = vlaneseq
  %v334 = vshrl.u32 %v333, 7
  %v335 = vsub.s32 0, %v334
  %v336 = vrot.slane %v232, %v335
  %v337 = vmul.f32 %v235, %v336
  %v338 = vmul.f32 %v239, %v336
  %v339 = vmul.f32 %v243, %v336
  %v340 = vmul.f32 %v247, %v336
  %v341 = vmul.f32 %v251, %v336
  %v342 = vmul.f32 %v255, %v336
  %v343 = vmul.f32 %v259, %v336
  %v344 = vmul.f32 %v263, %v336
  %v345 = vmul.f32 %v267, %v336
  %v346 = vmul.f32 %v271, %v336
  %v347 = vmul.f32 %v275, %v336
  %v348 = vmul.f32 %v279, %v336
  %v349 = vmul.f32 %v283, %v336
  %v350 = vmul.f32 %v287, %v336
  %v351 = vmul.f32 %v291, %v336
  %v352 = vmul.f32 %v295, %v336
  %v353 = vmul.f32 %v299, %v336
  %v354 = vmul.f32 %v303, %v336
  %v355 = vmul.f32 %v307, %v336
  %v356 = vmul.f32 %v311, %v336
  %v357 = vmul.f32 %v315, %v336
  %v358 = vmul.f32 %v319, %v336
  %v359 = vmul.f32 %v323, %v336
  %v360 = vmul.f32 %v327, %v336
  %v361 = vmul.f32 %v331, %v336
  %v362 = vadd.f32 %v207, %v337
  %v363 = vadd.f32 %v208, %v338
  %v364 = vadd.f32 %v209, %v339
  %v365 = vadd.f32 %v210, %v340
  %v366 = vadd.f32 %v211, %v341
  %v367 = vadd.f32 %v212, %v342
  %v368 = vadd.f32 %v213, %v343
  %v369 = vadd.f32 %v214, %v344
  %v370 = vadd.f32 %v215, %v345
  %v371 = vadd.f32 %v216, %v346
  %v372 = vadd.f32 %v217, %v347
  %v373 = vadd.f32 %v218, %v348
  %v374 = vadd.f32 %v219, %v349
  %v375 = vadd.f32 %v220, %v350
  %v376 = vadd.f32 %v221, %v351
  %v377 = vadd.f32 %v222, %v352
  %v378 = vadd.f32 %v223, %v353
  %v379 = vadd.f32 %v224, %v354
  %v380 = vadd.f32 %v225, %v355
  %v381 = vadd.f32 %v226, %v356
  %v382 = vadd.f32 %v227, %v357
  %v383 = vadd.f32 %v228, %v358
  %v384 = vadd.f32 %v229, %v359
  %v385 = vadd.f32 %v230, %v360
  %v386 = vadd.f32 %v231, %v361
  %v387 = vmax.f32 %v362, 0.0
  %v388 = vmax.f32 %v363, 0.0
  %v389 = vmax.f32 %v364, 0.0
  %v390 = vmax.f32 %v365, 0.0
  %v391 = vmax.f32 %v366, 0.0
  %v392 = vmax.f32 %v367, 0.0
  %v393 = vmax.f32 %v368, 0.0
  %v394 = vmax.f32 %v369, 0.0
  %v395 = vmax.f32 %v370, 0.0
  %v396 = vmax.f32 %v371, 0.0
  %v397 = vmax.f32 %v372, 0.0
  %v398 = vmax.f32 %v373, 0.0
  %v399 = vmax.f32 %v374, 0.0
  %v400 = vmax.f32 %v375, 0.0
  %v401 = vmax.f32 %v376, 0.0
  %v402 = vmax.f32 %v377, 0.0
  %v403 = vmax.f32 %v378, 0.0
  %v404 = vmax.f32 %v379, 0.0
  %v405 = vmax.f32 %v380, 0.0
  %v406 = vmax.f32 %v381, 0.0
  %v407 = vmax.f32 %v382, 0.0
  %v408 = vmax.f32 %v383, 0.0
  %v409 = vmax.f32 %v384, 0.0
  %v410 = vmax.f32 %v385, 0.0
  %v411 = vmax.f32 %v386, 0.0
  %v412 = vld [vmem:[%s3] sm:$0xff]
  %v413 = vld [vmem:[%s3 + $0x8] sm:$0xff]
  %v414 = vld [vmem:[%s3 + $0x10] sm:$0xff]
  %v415 = vld [vmem:[%s3 + $0x18] sm:$0xff]
  %v416 = vld [vmem:[%s4] sm:$0x1]
  %v418 = vlaneseq
  %v419 = vshrl.u32 %v418, 7
  %v420 = vsub.s32 0, %v419
  %v421 = vrot.slane %v416, %v420
  %vm423 = vcmask 261120
  %v425 = vsel %vm423, %v387, 0
  %v428 = vsel %vm423, %v388, 0
  %v431 = vsel %vm423, %v389, 0
  %v434 = vsel %vm423, %v390, 0
  %v437 = vsel %vm423, %v391, 0
  %v440 = vsel %vm423, %v392, 0
  %v443 = vsel %vm423, %v393, 0
  %v446 = vsel %vm423, %v394, 0
  %v449 = vsel %vm423, %v395, 0
  %v452 = vsel %vm423, %v396, 0
  %v455 = vsel %vm423, %v397, 0
  %v458 = vsel %vm423, %v398, 0
  %v461 = vsel %vm423, %v399, 0
  %v464 = vsel %vm423, %v400, 0
  %v467 = vsel %vm423, %v401, 0
  %v470 = vsel %vm423, %v402, 0
  %v473 = vsel %vm423, %v403, 0
  %v476 = vsel %vm423, %v404, 0
  %v479 = vsel %vm423, %v405, 0
  %v482 = vsel %vm423, %v406, 0
  %v485 = vsel %vm423, %v407, 0
  %v488 = vsel %vm423, %v408, 0
  %v491 = vsel %vm423, %v409, 0
  %v494 = vsel %vm423, %v410, 0
  %v497 = vsel %vm423, %v411, 0
  %499 = vmatprep.subr.mxu0 0.0
  %500 = vmatpush1.msra.mxu0 %v412
  %501 = vmatprep.subr.mxu0 0.0
  %502 = vmatpush1.msra.mxu0 %v413
  %503 = vmatprep.subr.mxu0 0.0
  %504 = vmatpush1.msra.mxu0 %v414
  %505 = vmatprep.subr.mxu0 0.0
  %506 = vmatpush1.msra.mxu0 %v415
  %507 = vmatprep.subr.mxu0 0.0
  %508 = vmatpush1.msra.mxu0 0.0
  %509 = vmatprep.subr.mxu0 0.0
  %510 = vmatpush1.msra.mxu0 0.0
  %511 = vmatprep.subr.mxu0 0.0
  %512 = vmatpush1.msra.mxu0 0.0
  %513 = vmatprep.subr.mxu0 0.0
  %514 = vmatpush1.msra.mxu0 0.0
  %515 = vmatprep.subr.mxu0 0.0
  %516 = vmatpush1.msra.mxu0 0.0
  %517 = vmatprep.subr.mxu0 0.0
  %518 = vmatpush1.msra.mxu0 0.0
  %519 = vmatprep.subr.mxu0 0.0
  %520 = vmatpush1.msra.mxu0 0.0
  %521 = vmatprep.subr.mxu0 0.0
  %522 = vmatpush1.msra.mxu0 0.0
  %523 = vmatprep.subr.mxu0 0.0
  %524 = vmatpush1.msra.mxu0 0.0
  %525 = vmatprep.subr.mxu0 0.0
  %526 = vmatpush1.msra.mxu0 0.0
  %527 = vmatprep.subr.mxu0 0.0
  %528 = vmatpush1.msra.mxu0 0.0
  %529 = vmatprep.subr.mxu0 0.0
  %530 = vmatpush1.msra.mxu0 0.0
  %531 = vmatprep.subr.mxu0 0.0
  %532 = vmatpush1.msra.mxu0 0.0
  %533 = vmatprep.subr.mxu0 0.0
  %534 = vmatpush1.msra.mxu0 0.0
  %535 = vmatprep.subr.mxu0 0.0
  %536 = vmatpush1.msra.mxu0 0.0
  %537 = vmatprep.subr.mxu0 0.0
  %538 = vmatpush1.msra.mxu0 0.0
  %539 = vmatprep.subr.mxu0 0.0
  %540 = vmatpush1.msra.mxu0 0.0
  %541 = vmatprep.subr.mxu0 0.0
  %542 = vmatpush1.msra.mxu0 0.0
  %543 = vmatprep.subr.mxu0 0.0
  %544 = vmatpush1.msra.mxu0 0.0
  %545 = vmatprep.subr.mxu0 0.0
  %546 = vmatpush1.msra.mxu0 0.0
  %547 = vmatprep.subr.mxu0 0.0
  %548 = vmatpush1.msra.mxu0 0.0
  %549 = vmatprep.subr.mxu0 0.0
  %550 = vmatpush1.msra.mxu0 0.0
  %551 = vmatprep.subr.mxu0 0.0
  %552 = vmatpush1.msra.mxu0 0.0
  %553 = vmatprep.subr.mxu0 0.0
  %554 = vmatpush1.msra.mxu0 0.0
  %555 = vmatprep.subr.mxu0 0.0
  %556 = vmatpush1.msra.mxu0 0.0
  %557 = vmatprep.subr.mxu0 0.0
  %558 = vmatpush1.msra.mxu0 0.0
  %559 = vmatprep.subr.mxu0 0.0
  %560 = vmatpush1.msra.mxu0 0.0
  %561 = vmatprep.subr.mxu0 0.0
  %562 = vmatpush1.msra.mxu0 0.0
  %563 = vmatprep.mubr.f32.mxu0 0.0
  %564 = vmatmul.mubr.f32.gmra.mrb[0].mxu0 %v425
  %v565 = vpop.f32.mrb[0].mxu0
  %v566 = vadd.f32 %v421, %v565
  %v567 = vpop.f32.mrb[0].mxu0
  %568 = vmatprep.mubr.f32.mxu0 0.0
  %569 = vmatmul.mubr.f32.gmra.mrb[0].mxu0 %v428
  %v570 = vpop.f32.mrb[0].mxu0
  %v571 = vadd.f32 %v421, %v570
  %v572 = vpop.f32.mrb[0].mxu0
  %573 = vmatprep.mubr.f32.mxu0 0.0
  %574 = vmatmul.mubr.f32.gmra.mrb[0].mxu0 %v431
  %v575 = vpop.f32.mrb[0].mxu0
  %v576 = vadd.f32 %v421, %v575
  %v577 = vpop.f32.mrb[0].mxu0
  %578 = vmatprep.mubr.f32.mxu0 0.0
  %579 = vmatmul.mubr.f32.gmra.mrb[0].mxu0 %v434
  %v580 = vpop.f32.mrb[0].mxu0
  %v581 = vadd.f32 %v421, %v580
  %v582 = vpop.f32.mrb[0].mxu0
  %583 = vmatprep.mubr.f32.mxu0 0.0
  %584 = vmatmul.mubr.f32.gmra.mrb[0].mxu0 %v437
  %v585 = vpop.f32.mrb[0].mxu0
  %v586 = vadd.f32 %v421, %v585
  %v587 = vpop.f32.mrb[0].mxu0
  %588 = vmatprep.mubr.f32.mxu0 0.0
  %589 = vmatmul.mubr.f32.gmra.mrb[0].mxu0 %v440
  %v590 = vpop.f32.mrb[0].mxu0
  %v591 = vadd.f32 %v421, %v590
  %v592 = vpop.f32.mrb[0].mxu0
  %593 = vmatprep.mubr.f32.mxu0 0.0
  %594 = vmatmul.mubr.f32.gmra.mrb[0].mxu0 %v443
  %v595 = vpop.f32.mrb[0].mxu0
  %v596 = vadd.f32 %v421, %v595
  %v597 = vpop.f32.mrb[0].mxu0
  %598 = vmatprep.mubr.f32.mxu0 0.0
  %599 = vmatmul.mubr.f32.gmra.mrb[0].mxu0 %v446
  %v600 = vpop.f32.mrb[0].mxu0
  %v601 = vadd.f32 %v421, %v600
  %v602 = vpop.f32.mrb[0].mxu0
  %603 = vmatprep.mubr.f32.mxu0 0.0
  %604 = vmatmul.mubr.f32.gmra.mrb[0].mxu0 %v449
  %v605 = vpop.f32.mrb[0].mxu0
  %v606 = vadd.f32 %v421, %v605
  %v607 = vpop.f32.mrb[0].mxu0
  %608 = vmatprep.mubr.f32.mxu0 0.0
  %609 = vmatmul.mubr.f32.gmra.mrb[0].mxu0 %v452
  %v610 = vpop.f32.mrb[0].mxu0
  %v611 = vadd.f32 %v421, %v610
  %v612 = vpop.f32.mrb[0].mxu0
  %613 = vmatprep.mubr.f32.mxu0 0.0
  %614 = vmatmul.mubr.f32.gmra.mrb[0].mxu0 %v455
  %v615 = vpop.f32.mrb[0].mxu0
  %v616 = vadd.f32 %v421, %v615
  %v617 = vpop.f32.mrb[0].mxu0
  %618 = vmatprep.mubr.f32.mxu0 0.0
  %619 = vmatmul.mubr.f32.gmra.mrb[0].mxu0 %v458
  %v620 = vpop.f32.mrb[0].mxu0
  %v621 = vadd.f32 %v421, %v620
  %v622 = vpop.f32.mrb[0].mxu0
  %623 = vmatprep.mubr.f32.mxu0 0.0
  %624 = vmatmul.mubr.f32.gmra.mrb[0].mxu0 %v461
  %v625 = vpop.f32.mrb[0].mxu0
  %v626 = vadd.f32 %v421, %v625
  %v627 = vpop.f32.mrb[0].mxu0
  %628 = vmatprep.mubr.f32.mxu0 0.0
  %629 = vmatmul.mubr.f32.gmra.mrb[0].mxu0 %v464
  %v630 = vpop.f32.mrb[0].mxu0
  %v631 = vadd.f32 %v421, %v630
  %v632 = vpop.f32.mrb[0].mxu0
  %633 = vmatprep.mubr.f32.mxu0 0.0
  %634 = vmatmul.mubr.f32.gmra.mrb[0].mxu0 %v467
  %v635 = vpop.f32.mrb[0].mxu0
  %v636 = vadd.f32 %v421, %v635
  %v637 = vpop.f32.mrb[0].mxu0
  %638 = vmatprep.mubr.f32.mxu0 0.0
  %639 = vmatmul.mubr.f32.gmra.mrb[0].mxu0 %v470
  %v640 = vpop.f32.mrb[0].mxu0
  %v641 = vadd.f32 %v421, %v640
  %v642 = vpop.f32.mrb[0].mxu0
  %643 = vmatprep.mubr.f32.mxu0 0.0
  %644 = vmatmul.mubr.f32.gmra.mrb[0].mxu0 %v473
  %v645 = vpop.f32.mrb[0].mxu0
  %v646 = vadd.f32 %v421, %v645
  %v647 = vpop.f32.mrb[0].mxu0
  %648 = vmatprep.mubr.f32.mxu0 0.0
  %649 = vmatmul.mubr.f32.gmra.mrb[0].mxu0 %v476
  %v650 = vpop.f32.mrb[0].mxu0
  %v651 = vadd.f32 %v421, %v650
  %v652 = vpop.f32.mrb[0].mxu0
  %653 = vmatprep.mubr.f32.mxu0 0.0
  %654 = vmatmul.mubr.f32.gmra.mrb[0].mxu0 %v479
  %v655 = vpop.f32.mrb[0].mxu0
  %v656 = vadd.f32 %v421, %v655
  %v657 = vpop.f32.mrb[0].mxu0
  %658 = vmatprep.mubr.f32.mxu0 0.0
  %659 = vmatmul.mubr.f32.gmra.mrb[0].mxu0 %v482
  %v660 = vpop.f32.mrb[0].mxu0
  %v661 = vadd.f32 %v421, %v660
  %v662 = vpop.f32.mrb[0].mxu0
  %663 = vmatprep.mubr.f32.mxu0 0.0
  %664 = vmatmul.mubr.f32.gmra.mrb[0].mxu0 %v485
  %v665 = vpop.f32.mrb[0].mxu0
  %v666 = vadd.f32 %v421, %v665
  %v667 = vpop.f32.mrb[0].mxu0
  %668 = vmatprep.mubr.f32.mxu0 0.0
  %669 = vmatmul.mubr.f32.gmra.mrb[0].mxu0 %v488
  %v670 = vpop.f32.mrb[0].mxu0
  %v671 = vadd.f32 %v421, %v670
  %v672 = vpop.f32.mrb[0].mxu0
  %673 = vmatprep.mubr.f32.mxu0 0.0
  %674 = vmatmul.mubr.f32.gmra.mrb[0].mxu0 %v491
  %v675 = vpop.f32.mrb[0].mxu0
  %v676 = vadd.f32 %v421, %v675
  %v677 = vpop.f32.mrb[0].mxu0
  %678 = vmatprep.mubr.f32.mxu0 0.0
  %679 = vmatmul.mubr.f32.gmra.mrb[0].mxu0 %v494
  %v680 = vpop.f32.mrb[0].mxu0
  %v681 = vadd.f32 %v421, %v680
  %v682 = vpop.f32.mrb[0].mxu0
  %683 = vmatprep.mubr.f32.mxu0 0.0
  %684 = vmatmul.mubr.f32.gmra.mrb[0].mxu0 %v497
  %v685 = vpop.f32.mrb[0].mxu0
  %v686 = vadd.f32 %v421, %v685
  %v687 = vpop.f32.mrb[0].mxu0
  %688 = vdwg.mxu0
  %689 = vst [vmem:[%s5] sm:$0xff] %v566
  %690 = vst [vmem:[%s5 + $0x8] sm:$0xff] %v571
  %691 = vst [vmem:[%s5 + $0x10] sm:$0xff] %v576
  %692 = vst [vmem:[%s5 + $0x18] sm:$0xff] %v581
  %693 = vst [vmem:[%s5 + $0x20] sm:$0xff] %v586
  %694 = vst [vmem:[%s5 + $0x28] sm:$0xff] %v591
  %695 = vst [vmem:[%s5 + $0x30] sm:$0xff] %v596
  %696 = vst [vmem:[%s5 + $0x38] sm:$0xff] %v601
  %697 = vst [vmem:[%s5 + $0x40] sm:$0xff] %v606
  %698 = vst [vmem:[%s5 + $0x48] sm:$0xff] %v611
  %699 = vst [vmem:[%s5 + $0x50] sm:$0xff] %v616
  %700 = vst [vmem:[%s5 + $0x58] sm:$0xff] %v621
  %701 = vst [vmem:[%s5 + $0x60] sm:$0xff] %v626
  %702 = vst [vmem:[%s5 + $0x68] sm:$0xff] %v631
  %703 = vst [vmem:[%s5 + $0x70] sm:$0xff] %v636
  %704 = vst [vmem:[%s5 + $0x78] sm:$0xff] %v641
  %705 = vst [vmem:[%s5 + $0x80] sm:$0xff] %v646
  %706 = vst [vmem:[%s5 + $0x88] sm:$0xff] %v651
  %707 = vst [vmem:[%s5 + $0x90] sm:$0xff] %v656
  %708 = vst [vmem:[%s5 + $0x98] sm:$0xff] %v661
  %709 = vst [vmem:[%s5 + $0xa0] sm:$0xff] %v666
  %710 = vst [vmem:[%s5 + $0xa8] sm:$0xff] %v671
  %711 = vst [vmem:[%s5 + $0xb0] sm:$0xff] %v676
  %712 = vst [vmem:[%s5 + $0xb8] sm:$0xff] %v681
  %713 = vst [vmem:[%s5 + $0xc0] sm:$0xff] %v686
  // Predicated region
  $region22: #{_net_forward_impl.1} parent=0 // pred_check
    _
  $region23: #{_net_forward_impl.1} parent=0 // pred_check_branch
    %715 = sbr.rel (0) target = $region25
  $region24: #{_net_forward_impl.1} parent=0 // pred_region
    _
  $region25: #{_net_forward_impl.1} parent=0 // pred_fallthru
    _
  // Predicated region
  $region26: #{_net_forward_impl.1} parent=0 // pred_check
    _
  $region27: #{_net_forward_impl.1} parent=0 // pred_check_branch
    %717 = sbr.rel (0) target = $region29
  $region28: #{_net_forward_impl.1} parent=0 // pred_region
    _
  $region29: #{_net_forward_impl.1} parent=0 // pred_fallthru
    _

</llo_original>
